<compile_context>
chip_gen: v6e
topology: v6e:2x2x1
jax: 0.10.0
libtpu: 0.0.40
codegen_flags: <defaults>
</compile_context>

<pallas_src>
import functools

import jax
import jax.numpy as jnp
from jax import lax
from jax.experimental import pallas as pl
from jax.experimental.pallas import tpu as pltpu

# --- model hyperparameters (small, consistent with the module) ---------------
INPUT_SIZE = 16
HIDDEN_SIZE = 32
OUTPUT_SIZE = 1            # forward does out.squeeze(1) => output_size == 1
NUM_HIDDEN_LAYERS = 2
DROPOUT = 0.5              # identity at inference (no RNG needed)

LANE = 128                 # TPU lane width; hidden feature dim is padded to this
NUM_MATMUL_LAYERS = 1 + NUM_HIDDEN_LAYERS   # fc1 + hidden layers (fc2 is fused below)
OUT_SUBLANES = 8           # minimal f32 sublane tile for the compact output block


def fcn_kernel(x_ref, w1_ref, wh_ref, b_ref, w2_ref, b2_ref, out_ref):
    """One batch tile of the whole MLP, entirely in VMEM.

    x_ref  : (TB, INPUT_SIZE)                  f32  raw inputs (cast to bf16 in-kernel)
    w1_ref : (INPUT_SIZE, LANE)                bf16 fc1 weight (cols >= H are zero)
    wh_ref : (NUM_HIDDEN_LAYERS, LANE, LANE)   bf16 hidden weights, zero-padded
    b_ref  : (NUM_MATMUL_LAYERS, LANE)         f32  per-layer biases (zero beyond H)
    w2_ref : (OUT_SUBLANES, LANE)              bf16 fc2 weight row replicated 8x
    b2_ref : (1,)                              f32  fc2 bias scalar (SMEM)
    out_ref: (OUT_SUBLANES, TB)                f32  lane-dense result (row 0 used)
    """
    # fc1: bf16 MXU matmul (K = INPUT_SIZE), f32 accumulation, f32 bias add on VPU.
    x = x_ref[...].astype(jnp.bfloat16)
    z = jnp.dot(x, w1_ref[...], preferred_element_type=jnp.float32) + b_ref[0:1, :]
    # dropout == identity at inference; ReLU in f32 (v5e has no bf16 VPU), recast for MXU.
    h = jnp.maximum(z, 0.0).astype(jnp.bfloat16)

    # hidden layers (static Python unroll; NUM_HIDDEN_LAYERS is tiny).
    for l in range(wh_ref.shape[0]):
        z = jnp.dot(h, wh_ref[l], preferred_element_type=jnp.float32) + b_ref[l + 1:l + 2, :]
        h = jnp.maximum(z, 0.0).astype(jnp.bfloat16)

    # fc2 (H -> 1), fused onto the (idle) MXU by contracting the lane dim of h:
    #   out[s, t] = sum_d w2[s, d] * h[t, d]   -> already lane-dense, unmasked stores.
    out = lax.dot_general(w2_ref[...], h,
                          dimension_numbers=(((1,), (1,)), ((), ())),
                          preferred_element_type=jnp.float32)
    out_ref[...] = out + b2_ref[0]             # fc2 bias added in f32


def pack_params(raw_params):
    """Pack PyTorch-layout params into padded kernel operands.

    raw layout (same as nn.Linear): w1 (H, I), b1 (H,), wh (L, H, H), bh (L, H),
    w2 (O, H), b2 (O,) with O == 1.
    Weights -> zero-padded bf16 (MXU inputs); biases stay f32 (added on the VPU).
    Zero padding beyond H keeps padded lanes exactly 0 through every ReLU, so the
    math matches the unpadded network.
    """
    w1, b1, wh, bh, w2, b2 = raw_params

    w1_pad = jnp.zeros((INPUT_SIZE, LANE), jnp.float32)
    w1_pad = w1_pad.at[:, :HIDDEN_SIZE].set(w1.T).astype(jnp.bfloat16)

    wh_pad = jnp.zeros((NUM_HIDDEN_LAYERS, LANE, LANE), jnp.float32)
    wh_pad = wh_pad.at[:, :HIDDEN_SIZE, :HIDDEN_SIZE].set(jnp.transpose(wh, (0, 2, 1)))
    wh_pad = wh_pad.astype(jnp.bfloat16)

    b_all = jnp.zeros((NUM_MATMUL_LAYERS, LANE), jnp.float32)
    b_all = b_all.at[0, :HIDDEN_SIZE].set(b1)
    b_all = b_all.at[1:, :HIDDEN_SIZE].set(bh)

    w2_mat = jnp.zeros((OUT_SUBLANES, LANE), jnp.float32)
    w2_mat = w2_mat.at[:, :HIDDEN_SIZE].set(jnp.broadcast_to(w2[0], (OUT_SUBLANES, HIDDEN_SIZE)))
    w2_mat = w2_mat.astype(jnp.bfloat16)

    b2_s = b2.astype(jnp.float32).reshape((1,))
    return w1_pad, wh_pad, b_all, w2_mat, b2_s


def _round_up(n, m):
    return -(-n // m) * m


def _choose_tb(b_pad128):
    """Default batch-tile policy (overridable via tb=).

    <=256 rows: one block (single-TC v5e/v6e pay per-grid-step overhead for nothing).
    >256 rows : 256-row blocks -> >=2 blocks so v7x's two TensorCores both get work
                via the 'parallel' batch axis; 256-512 is the measured sweet spot.
    """
    if b_pad128 <= 256:
        return b_pad128
    return 256


@functools.partial(jax.jit, static_argnames=("tb",))
def fcn_forward(x, w1_pad, wh_pad, b_all, w2_mat, b2_s, *, tb=None):
    """x: (B, INPUT_SIZE) f32 -> (B,) f32  (matches out.squeeze(1) with output_size==1)."""
    B = x.shape[0]
    if tb is None:
        tb = _choose_tb(_round_up(B, 128))
    b_pad = _round_up(B, tb)
    n_blocks = b_pad // tb
    if b_pad != B:
        x = jnp.pad(x, ((0, b_pad - B), (0, 0)))   # tiny; only when B is not a tile multiple

    nl = wh_pad.shape[0]
    flops = 2 * b_pad * LANE * (INPUT_SIZE + nl * LANE + OUT_SUBLANES) + 4 * b_pad * LANE
    bytes_accessed = (x.size * 4 + w1_pad.size * 2 + wh_pad.size * 2
                      + b_all.size * 4 + w2_mat.size * 2 + 4
                      + OUT_SUBLANES * b_pad * 4)

    out = pl.pallas_call(
        fcn_kernel,
        out_shape=jax.ShapeDtypeStruct((OUT_SUBLANES, b_pad), jnp.float32),
        grid=(n_blocks,),
        in_specs=[
            pl.BlockSpec((tb, INPUT_SIZE), lambda i: (i, 0)),            # batch tile, raw f32
            pl.BlockSpec((INPUT_SIZE, LANE), lambda i: (0, 0)),          # resident fc1 weight
            pl.BlockSpec((nl, LANE, LANE), lambda i: (0, 0, 0)),         # resident hidden weights
            pl.BlockSpec((NUM_MATMUL_LAYERS, LANE), lambda i: (0, 0)),   # resident f32 biases
            pl.BlockSpec((OUT_SUBLANES, LANE), lambda i: (0, 0)),        # resident fc2 weight
            pl.BlockSpec(memory_space=pltpu.MemorySpace.SMEM),           # fc2 bias scalar
        ],
        out_specs=pl.BlockSpec((OUT_SUBLANES, tb), lambda i: (0, i)),    # lane-dense compact out
        compiler_params=pltpu.CompilerParams(dimension_semantics=("parallel",)),
        cost_estimate=pl.CostEstimate(flops=flops, transcendentals=0,
                                      bytes_accessed=bytes_accessed),
    )(x, w1_pad, wh_pad, b_all, w2_mat, b2_s)

    return out[0, :B]                         # contiguous row slice == out.squeeze(1)


def init_raw_params(key):
    """Deterministic params in PyTorch nn.Linear layout (weight = (out, in))."""
    ks = jax.random.split(key, 6)
    scale = 0.1
    w1 = scale * jax.random.normal(ks[0], (HIDDEN_SIZE, INPUT_SIZE), jnp.float32)
    b1 = scale * jax.random.normal(ks[1], (HIDDEN_SIZE,), jnp.float32)
    wh = scale * jax.random.normal(
        ks[2], (NUM_HIDDEN_LAYERS, HIDDEN_SIZE, HIDDEN_SIZE), jnp.float32)
    bh = scale * jax.random.normal(ks[3], (NUM_HIDDEN_LAYERS, HIDDEN_SIZE), jnp.float32)
    w2 = scale * jax.random.normal(ks[4], (OUTPUT_SIZE, HIDDEN_SIZE), jnp.float32)
    b2 = scale * jax.random.normal(ks[5], (OUTPUT_SIZE,), jnp.float32)
    return (w1, b1, wh, bh, w2, b2)


def fcn_reference_f32(x, raw_params):
    """Pure-f32 JAX reference with the original (unpadded) PyTorch math."""
    w1, b1, wh, bh, w2, b2 = raw_params
    h = jnp.maximum(x @ w1.T + b1, 0.0)
    for l in range(wh.shape[0]):
        h = jnp.maximum(h @ wh[l].T + bh[l], 0.0)
    out = h @ w2.T + b2
    return out[:, 0]


def fcn_reference_packed(x, w1_pad, wh_pad, b_all, w2_mat, b2_s):
    """Matched-precision JAX reference (same bf16-MXU / f32-bias math as the kernel)."""
    h = x.astype(jnp.bfloat16)
    z = jnp.dot(h, w1_pad, preferred_element_type=jnp.float32) + b_all[0:1, :]
    h = jnp.maximum(z, 0.0).astype(jnp.bfloat16)
    for l in range(wh_pad.shape[0]):
        z = jnp.dot(h, wh_pad[l], preferred_element_type=jnp.float32) + b_all[l + 1:l + 2, :]
        h = jnp.maximum(z, 0.0).astype(jnp.bfloat16)
    out = lax.dot_general(w2_mat, h, dimension_numbers=(((1,), (1,)), ((), ())),
                          preferred_element_type=jnp.float32)
    return out[0] + b2_s[0]


if __name__ == "__main__":
    BATCH = 512   # batched to amortize launch; grid=(2,) of 256-row blocks on all chips
    key = jax.random.PRNGKey(0)
    kx, kp = jax.random.split(key)
    x = jax.random.normal(kx, (BATCH, INPUT_SIZE), jnp.float32)

    raw_params = init_raw_params(kp)
    packed = pack_params(raw_params)

    y = jax.block_until_ready(fcn_forward(x, *packed))
    assert y.shape == (BATCH,), y.shape

    # 1) matched-precision check (same bf16-weight / f32-bias math) -> tight tolerance
    y_ref = fcn_reference_packed(x, *packed)
    assert jnp.allclose(y, y_ref, atol=1e-4, rtol=1e-3), \
        float(jnp.max(jnp.abs(y - y_ref)))

    # 2) semantics check vs. original f32 PyTorch math (loose: bf16 MXU weights)
    y_f32 = fcn_reference_f32(x, raw_params)
    assert jnp.allclose(y, y_f32, atol=2e-2, rtol=2e-2), \
        float(jnp.max(jnp.abs(y - y_f32)))

    # 3) odd small batch exercises the padding + single-block (grid=(1,)) path
    y_small = jax.block_until_ready(fcn_forward(x[:40], *packed))
    assert y_small.shape == (40,)
    assert jnp.allclose(y_small, y[:40], atol=1e-5, rtol=1e-5), \
        float(jnp.max(jnp.abs(y_small - y[:40])))

    # NOTE: dropout layers are identity at inference; no RNG/masking is applied.
    print("KERNEL_OK")
</pallas_src>

<mosaic_0001>
module attributes {stable_mosaic.version = 11 : i64} {
  func.func @fcn_kernel(%arg0: i32, %arg1: memref<256x16xf32, #tpu.memory_space<vmem>>, %arg2: memref<16x128xbf16, #tpu.memory_space<vmem>>, %arg3: memref<2x128x128xbf16, #tpu.memory_space<vmem>>, %arg4: memref<3x128xf32, #tpu.memory_space<vmem>>, %arg5: memref<8x128xbf16, #tpu.memory_space<vmem>>, %arg6: memref<1xf32, #tpu.memory_space<smem>>, %arg7: memref<8x256xf32, #tpu.memory_space<vmem>>) attributes {dimension_semantics = [#tpu.dimension_semantics<parallel>], iteration_bounds = array<i64: 2>, scalar_prefetch = 0 : i64, scratch_operands = 0 : i64, tpu.core_type = #tpu.core_type<tc>, window_params = [{transform_indices = @transform_0, window_bounds = array<i64: 256, 16>}, {pipeline_mode = #tpu.pipeline_mode<synchronous>, transform_indices = @transform_1, window_bounds = array<i64: 16, 128>}, {pipeline_mode = #tpu.pipeline_mode<synchronous>, transform_indices = @transform_2, window_bounds = array<i64: 2, 128, 128>}, {pipeline_mode = #tpu.pipeline_mode<synchronous>, transform_indices = @transform_3, window_bounds = array<i64: 3, 128>}, {pipeline_mode = #tpu.pipeline_mode<synchronous>, transform_indices = @transform_4, window_bounds = array<i64: 8, 128>}, {transform_indices = @transform_5, window_bounds = array<i64: 1>}, {transform_indices = @transform_6, window_bounds = array<i64: 8, 256>}]} {
    %c0 = arith.constant 0 : index
    %c0_0 = arith.constant 0 : index
    %0 = vector.load %arg1[%c0, %c0_0] : memref<256x16xf32, #tpu.memory_space<vmem>>, vector<256x16xf32>
    %1 = arith.truncf %0 : vector<256x16xf32> to vector<256x16xbf16>
    %c0_1 = arith.constant 0 : index
    %c0_2 = arith.constant 0 : index
    %2 = vector.load %arg2[%c0_1, %c0_2] : memref<16x128xbf16, #tpu.memory_space<vmem>>, vector<16x128xbf16>
    %cst = arith.constant dense<0.000000e+00> : vector<256x128xf32>
    %3 = tpu.matmul %1, %2, %cst {dimension_numbers = #tpu.dot_dimension_numbers<[1], [0], [0], [1], [0, 0, 1, 1], [], []>} : vector<256x16xbf16>, vector<16x128xbf16>, vector<256x128xf32> -> vector<256x128xf32>
    %c0_3 = arith.constant 0 : index
    %c0_4 = arith.constant 0 : index
    %4 = vector.load %arg4[%c0_3, %c0_4] : memref<3x128xf32, #tpu.memory_space<vmem>>, vector<1x128xf32>
    %5 = vector.broadcast %4 : vector<1x128xf32> to vector<256x128xf32>
    %6 = arith.addf %3, %5 : vector<256x128xf32>
    %cst_5 = arith.constant 0.000000e+00 : f32
    %7 = vector.broadcast %cst_5 : f32 to vector<256x128xf32>
    %8 = arith.maximumf %6, %7 : vector<256x128xf32>
    %9 = arith.truncf %8 : vector<256x128xf32> to vector<256x128xbf16>
    %c0_6 = arith.constant 0 : index
    %c0_7 = arith.constant 0 : index
    %c0_8 = arith.constant 0 : index
    %10 = vector.load %arg3[%c0_6, %c0_7, %c0_8] : memref<2x128x128xbf16, #tpu.memory_space<vmem>>, vector<1x128x128xbf16>
    %11 = vector.shape_cast %10 : vector<1x128x128xbf16> to vector<128x128xbf16>
    %cst_9 = arith.constant dense<0.000000e+00> : vector<256x128xf32>
    %12 = tpu.matmul %9, %11, %cst_9 {dimension_numbers = #tpu.dot_dimension_numbers<[1], [0], [0], [1], [0, 0, 1, 1], [], []>} : vector<256x128xbf16>, vector<128x128xbf16>, vector<256x128xf32> -> vector<256x128xf32>
    %c1 = arith.constant 1 : index
    %c0_10 = arith.constant 0 : index
    %13 = vector.load %arg4[%c1, %c0_10] : memref<3x128xf32, #tpu.memory_space<vmem>>, vector<1x128xf32>
    %14 = vector.broadcast %13 : vector<1x128xf32> to vector<256x128xf32>
    %15 = arith.addf %12, %14 : vector<256x128xf32>
    %cst_11 = arith.constant 0.000000e+00 : f32
    %16 = vector.broadcast %cst_11 : f32 to vector<256x128xf32>
    %17 = arith.maximumf %15, %16 : vector<256x128xf32>
    %18 = arith.truncf %17 : vector<256x128xf32> to vector<256x128xbf16>
    %c1_12 = arith.constant 1 : index
    %c0_13 = arith.constant 0 : index
    %c0_14 = arith.constant 0 : index
    %19 = vector.load %arg3[%c1_12, %c0_13, %c0_14] : memref<2x128x128xbf16, #tpu.memory_space<vmem>>, vector<1x128x128xbf16>
    %20 = vector.shape_cast %19 : vector<1x128x128xbf16> to vector<128x128xbf16>
    %cst_15 = arith.constant dense<0.000000e+00> : vector<256x128xf32>
    %21 = tpu.matmul %18, %20, %cst_15 {dimension_numbers = #tpu.dot_dimension_numbers<[1], [0], [0], [1], [0, 0, 1, 1], [], []>} : vector<256x128xbf16>, vector<128x128xbf16>, vector<256x128xf32> -> vector<256x128xf32>
    %c2 = arith.constant 2 : index
    %c0_16 = arith.constant 0 : index
    %22 = vector.load %arg4[%c2, %c0_16] : memref<3x128xf32, #tpu.memory_space<vmem>>, vector<1x128xf32>
    %23 = vector.broadcast %22 : vector<1x128xf32> to vector<256x128xf32>
    %24 = arith.addf %21, %23 : vector<256x128xf32>
    %cst_17 = arith.constant 0.000000e+00 : f32
    %25 = vector.broadcast %cst_17 : f32 to vector<256x128xf32>
    %26 = arith.maximumf %24, %25 : vector<256x128xf32>
    %27 = arith.truncf %26 : vector<256x128xf32> to vector<256x128xbf16>
    %c0_18 = arith.constant 0 : index
    %c0_19 = arith.constant 0 : index
    %28 = vector.load %arg5[%c0_18, %c0_19] : memref<8x128xbf16, #tpu.memory_space<vmem>>, vector<8x128xbf16>
    %cst_20 = arith.constant dense<0.000000e+00> : vector<8x256xf32>
    %29 = tpu.matmul %28, %27, %cst_20 {dimension_numbers = #tpu.dot_dimension_numbers<[1], [1], [0], [0], [0, 0, 1, 0], [], []>} : vector<8x128xbf16>, vector<256x128xbf16>, vector<8x256xf32> -> vector<8x256xf32>
    %c0_21 = arith.constant 0 : index
    %30 = memref.load %arg6[%c0_21] : memref<1xf32, #tpu.memory_space<smem>>
    %31 = vector.broadcast %30 : f32 to vector<8x256xf32>
    %32 = arith.addf %29, %31 : vector<8x256xf32>
    %c0_22 = arith.constant 0 : index
    %c0_23 = arith.constant 0 : index
    %33 = vector.load %arg7[%c0_22, %c0_23] : memref<8x256xf32, #tpu.memory_space<vmem>>, vector<8x256xf32>
    tpu.vector_store %arg7[%c0_22, %c0_23], %32 {strides = array<i32>} : memref<8x256xf32, #tpu.memory_space<vmem>>, vector<8x256xf32>,
    return
  }
  func.func @transform_0(%arg0: i32) -> (i32, i32) {
    %c0_i32 = arith.constant 0 : i32
    %c0_i32_0 = arith.constant 0 : i32
    return %arg0, %c0_i32 : i32, i32
  }
  func.func @transform_1(%arg0: i32) -> (i32, i32) {
    %c0_i32 = arith.constant 0 : i32
    %c0_i32_0 = arith.constant 0 : i32
    %c0_i32_1 = arith.constant 0 : i32
    return %c0_i32, %c0_i32_0 : i32, i32
  }
  func.func @transform_2(%arg0: i32) -> (i32, i32, i32) {
    %c0_i32 = arith.constant 0 : i32
    %c0_i32_0 = arith.constant 0 : i32
    %c0_i32_1 = arith.constant 0 : i32
    %c0_i32_2 = arith.constant 0 : i32
    return %c0_i32, %c0_i32_0, %c0_i32_1 : i32, i32, i32
  }
  func.func @transform_3(%arg0: i32) -> (i32, i32) {
    %c0_i32 = arith.constant 0 : i32
    %c0_i32_0 = arith.constant 0 : i32
    %c0_i32_1 = arith.constant 0 : i32
    return %c0_i32, %c0_i32_0 : i32, i32
  }
  func.func @transform_4(%arg0: i32) -> (i32, i32) {
    %c0_i32 = arith.constant 0 : i32
    %c0_i32_0 = arith.constant 0 : i32
    %c0_i32_1 = arith.constant 0 : i32
    return %c0_i32, %c0_i32_0 : i32, i32
  }
  func.func @transform_5(%arg0: i32) -> i32 {
    %c0_i32 = arith.constant 0 : i32
    %c0_i32_0 = arith.constant 0 : i32
    return %c0_i32 : i32
  }
  func.func @transform_6(%arg0: i32) -> (i32, i32) {
    %c0_i32 = arith.constant 0 : i32
    %c0_i32_0 = arith.constant 0 : i32
    return %c0_i32, %arg0 : i32, i32
  }
}

</mosaic_0001>

<llo_original>
// kernel: fcn_forward.1
$region0: #{fcn_forward.1}
  #allocation0 [shape = 'u32[]', space=smem, size = 0x4, offset = 0x4, fixed_abs, tag = 'smem constant byte address 0x4 - core index']
  #allocation1 [shape = 'u32[144,128]{1,0:T(1,128)}', space=vmem, size = 0x12000, scoped, tag = 'internal scratch']
  #allocation2 [shape = 'f32[1]{0:T(128)S(6)}', space=smem, size = 0x200, scoped, tag = 'scoped memory for fcn_forward.1']
  %s0 = inlined_call_operand.vmem [shape: f32[512,16], index: 0, kind: input, shape index: {}]
  %s1 = inlined_call_operand.vmem [shape: bf16[16,128], index: 1, kind: input, shape index: {}]
  %s2 = inlined_call_operand.vmem [shape: bf16[2,128,128], index: 2, kind: input, shape index: {}]
  %s3 = inlined_call_operand.vmem [shape: f32[3,128], index: 3, kind: input, shape index: {}]
  %s4 = inlined_call_operand.vmem [shape: bf16[8,128], index: 4, kind: input, shape index: {}]
  %s5 = inlined_call_operand.<no memory space> [shape: f32[1], index: 5, kind: input, shape index: {}]
  %s6 = inlined_call_operand.vmem [shape: f32[8,512], index: 6, kind: output, shape index: {}]
  %s7 = sld [smem:[#allocation0]]
  $region57: #{fcn_forward.1} parent=0
    _
  %s9 = ssub.s32 1, %s7
  %s10 = scalar_select 0, %s9, %s7
  %11 = sst [smem:[#allocation2]] %s5
  loop: start=0, step=1, limit=4
  $region2: #{fcn_forward.1} parent=0 // loop_pre_header
    _
  $region3: #{fcn_forward.1} parent=0 // loop_header
    %s13 = sphi 0, %s17
    %p14 = scmp.ge.s32.totalorder %s13, 4
    %s23 = sphi 0, %s25
    %s26 = sphi 0, %s23
    %s27 = sphi 0, %s26
    %s43 = sphi 0, %s27
    %s47 = sphi 0, %s47
    %s49 = sphi 0, %s47
    %s50 = sphi 0, %s49
    %s64 = sphi 0, %s50
    %s68 = sphi 0, %s68
    %s70 = sphi 0, %s68
    %s71 = sphi 0, %s70
    %s85 = sphi 0, %s71
    %s89 = sphi 0, %s89
    %s91 = sphi 0, %s89
    %s92 = sphi 0, %s91
    %s106 = sphi 0, %s92
    %s110 = sphi 0, %s110
    %s112 = sphi 0, %s110
    %s113 = sphi 0, %s112
    %s127 = sphi 0, %s113
    %s131 = sphi 0, %s131
    %s133 = sphi 0, %s131
    %s134 = sphi 0, %s133
    %s148 = sphi 0, %s134
    %s154 = sphi 0, %s156
    %s157 = sphi 0, %s154
    %s158 = sphi 0, %s157
    %s174 = sphi 0, %s158
  $region4: #{fcn_forward.1} parent=0 // loop_header_branch
    %16 = sbr.rel (%p14) target = $region8
  $region5: #{fcn_forward.1} parent=0 // loop_body
    %s18 = ssub.s32 %s13, 1
    %s19 = ssub.s32 %s13, 2
    %s20 = sadd.s32 %s13, 1
    %s21 = ssub.s32 %s13, %s20
    %p22 = scmp.eq.s32.totalorder %s21, 0
    %s24 = sadd.s32 %s23, 1
    %s25 = scalar_select %p22, %s23, %s24
    %p28 = pneg %p22
    %p29 = scmp.eq.s32.totalorder %s13, 1
    %p30 = por %p28, %p29
    %p31 = scmp.ne.s32.totalorder %s23, %s26
    %p32 = scmp.eq.s32.totalorder %s13, 0
    %p33 = por %p31, %p32
    %p34 = scmp.ne.s32.totalorder %s23, %s26
    %p35 = scmp.eq.s32.totalorder %s18, 1
    %p36 = por %p34, %p35
    %p37 = scmp.ne.s32.totalorder %s26, %s27
    %p38 = scmp.eq.s32.totalorder %s18, 0
    %p39 = por %p37, %p38
    %p40 = scmp.ne.s32.totalorder %s26, %s27
    %p41 = scmp.eq.s32.totalorder %s19, 1
    %p42 = por %p40, %p41
    %p44 = scmp.ne.s32.totalorder %s27, %s43
    %p45 = scmp.eq.s32.totalorder %s19, 0
    %p46 = por %p44, %p45
    %s48 = sadd.s32 %s47, 1
    %p51 = scmp.eq.s32.totalorder %s13, 1
    %p52 = scmp.ne.s32.totalorder %s47, %s49
    %p53 = scmp.eq.s32.totalorder %s13, 0
    %p54 = por %p52, %p53
    %p55 = scmp.ne.s32.totalorder %s47, %s49
    %p56 = scmp.eq.s32.totalorder %s18, 1
    %p57 = por %p55, %p56
    %p58 = scmp.ne.s32.totalorder %s49, %s50
    %p59 = scmp.eq.s32.totalorder %s18, 0
    %p60 = por %p58, %p59
    %p61 = scmp.ne.s32.totalorder %s49, %s50
    %p62 = scmp.eq.s32.totalorder %s19, 1
    %p63 = por %p61, %p62
    %p65 = scmp.ne.s32.totalorder %s50, %s64
    %p66 = scmp.eq.s32.totalorder %s19, 0
    %p67 = por %p65, %p66
    %s69 = sadd.s32 %s68, 1
    %p72 = scmp.eq.s32.totalorder %s13, 1
    %p73 = scmp.ne.s32.totalorder %s68, %s70
    %p74 = scmp.eq.s32.totalorder %s13, 0
    %p75 = por %p73, %p74
    %p76 = scmp.ne.s32.totalorder %s68, %s70
    %p77 = scmp.eq.s32.totalorder %s18, 1
    %p78 = por %p76, %p77
    %p79 = scmp.ne.s32.totalorder %s70, %s71
    %p80 = scmp.eq.s32.totalorder %s18, 0
    %p81 = por %p79, %p80
    %p82 = scmp.ne.s32.totalorder %s70, %s71
    %p83 = scmp.eq.s32.totalorder %s19, 1
    %p84 = por %p82, %p83
    %p86 = scmp.ne.s32.totalorder %s71, %s85
    %p87 = scmp.eq.s32.totalorder %s19, 0
    %p88 = por %p86, %p87
    %s90 = sadd.s32 %s89, 1
    %p93 = scmp.eq.s32.totalorder %s13, 1
    %p94 = scmp.ne.s32.totalorder %s89, %s91
    %p95 = scmp.eq.s32.totalorder %s13, 0
    %p96 = por %p94, %p95
    %p97 = scmp.ne.s32.totalorder %s89, %s91
    %p98 = scmp.eq.s32.totalorder %s18, 1
    %p99 = por %p97, %p98
    %p100 = scmp.ne.s32.totalorder %s91, %s92
    %p101 = scmp.eq.s32.totalorder %s18, 0
    %p102 = por %p100, %p101
    %p103 = scmp.ne.s32.totalorder %s91, %s92
    %p104 = scmp.eq.s32.totalorder %s19, 1
    %p105 = por %p103, %p104
    %p107 = scmp.ne.s32.totalorder %s92, %s106
    %p108 = scmp.eq.s32.totalorder %s19, 0
    %p109 = por %p107, %p108
    %s111 = sadd.s32 %s110, 1
    %p114 = scmp.eq.s32.totalorder %s13, 1
    %p115 = scmp.ne.s32.totalorder %s110, %s112
    %p116 = scmp.eq.s32.totalorder %s13, 0
    %p117 = por %p115, %p116
    %p118 = scmp.ne.s32.totalorder %s110, %s112
    %p119 = scmp.eq.s32.totalorder %s18, 1
    %p120 = por %p118, %p119
    %p121 = scmp.ne.s32.totalorder %s112, %s113
    %p122 = scmp.eq.s32.totalorder %s18, 0
    %p123 = por %p121, %p122
    %p124 = scmp.ne.s32.totalorder %s112, %s113
    %p125 = scmp.eq.s32.totalorder %s19, 1
    %p126 = por %p124, %p125
    %p128 = scmp.ne.s32.totalorder %s113, %s127
    %p129 = scmp.eq.s32.totalorder %s19, 0
    %p130 = por %p128, %p129
    %s132 = sadd.s32 %s131, 1
    %p135 = scmp.eq.s32.totalorder %s13, 1
    %p136 = scmp.ne.s32.totalorder %s131, %s133
    %p137 = scmp.eq.s32.totalorder %s13, 0
    %p138 = por %p136, %p137
    %p139 = scmp.ne.s32.totalorder %s131, %s133
    %p140 = scmp.eq.s32.totalorder %s18, 1
    %p141 = por %p139, %p140
    %p142 = scmp.ne.s32.totalorder %s133, %s134
    %p143 = scmp.eq.s32.totalorder %s18, 0
    %p144 = por %p142, %p143
    %p145 = scmp.ne.s32.totalorder %s133, %s134
    %p146 = scmp.eq.s32.totalorder %s19, 1
    %p147 = por %p145, %p146
    %p149 = scmp.ne.s32.totalorder %s134, %s148
    %p150 = scmp.eq.s32.totalorder %s19, 0
    %p151 = por %p149, %p150
    %s152 = ssub.s32 %s13, %s20
    %p153 = scmp.eq.s32.totalorder %s152, 0
    %s155 = sadd.s32 %s154, 1
    %s156 = scalar_select %p153, %s154, %s155
    %p159 = pneg %p153
    %p160 = scmp.eq.s32.totalorder %s13, 1
    %p161 = por %p159, %p160
    %p162 = scmp.ne.s32.totalorder %s154, %s157
    %p163 = scmp.eq.s32.totalorder %s13, 0
    %p164 = por %p162, %p163
    %p165 = scmp.ne.s32.totalorder %s154, %s157
    %p166 = scmp.eq.s32.totalorder %s18, 1
    %p167 = por %p165, %p166
    %p168 = scmp.ne.s32.totalorder %s157, %s158
    %p169 = scmp.eq.s32.totalorder %s18, 0
    %p170 = por %p168, %p169
    %p171 = scmp.ne.s32.totalorder %s157, %s158
    %p172 = scmp.eq.s32.totalorder %s19, 1
    %p173 = por %p171, %p172
    %p175 = scmp.ne.s32.totalorder %s158, %s174
    %p176 = scmp.eq.s32.totalorder %s19, 0
    %p177 = por %p175, %p176
    %p178 = scmp.le.s32.totalorder 1, %s13
    %p179 = scmp.lt.s32.totalorder %s13, 3
    %p180 = pnand %p178, %p179
    %p181 = pneg %p180
    // Predicated region
    $region9: #{fcn_forward.1} parent=5 // pred_check
      _
    $region10: #{fcn_forward.1} parent=5 // pred_check_branch
      %183 = sbr.rel (%p180) target = $region12
    $region11: #{fcn_forward.1} parent=5 // pred_region
      %s184 = ssub.s32 %s13, 1
      // Predicated region
      $region13: #{fcn_forward.1} parent=11 // pred_check
        %p185 = pneg %p60
      $region14: #{fcn_forward.1} parent=11 // pred_check_branch
        %187 = sbr.rel (%p185) target = $region16
      $region15: #{fcn_forward.1} parent=11 // pred_region
        _
      $region16: #{fcn_forward.1} parent=11 // pred_fallthru
        _
      // Predicated region
      $region17: #{fcn_forward.1} parent=11 // pred_check
        %p188 = pneg %p81
      $region18: #{fcn_forward.1} parent=11 // pred_check_branch
        %190 = sbr.rel (%p188) target = $region20
      $region19: #{fcn_forward.1} parent=11 // pred_region
        _
      $region20: #{fcn_forward.1} parent=11 // pred_fallthru
        _
      // Predicated region
      $region21: #{fcn_forward.1} parent=11 // pred_check
        %p191 = pneg %p102
      $region22: #{fcn_forward.1} parent=11 // pred_check_branch
        %193 = sbr.rel (%p191) target = $region24
      $region23: #{fcn_forward.1} parent=11 // pred_region
        _
      $region24: #{fcn_forward.1} parent=11 // pred_fallthru
        _
      // Predicated region
      $region25: #{fcn_forward.1} parent=11 // pred_check
        %p194 = pneg %p123
      $region26: #{fcn_forward.1} parent=11 // pred_check_branch
        %196 = sbr.rel (%p194) target = $region28
      $region27: #{fcn_forward.1} parent=11 // pred_region
        _
      $region28: #{fcn_forward.1} parent=11 // pred_fallthru
        _
      // Predicated region
      $region29: #{fcn_forward.1} parent=11 // pred_check
        %p197 = pneg %p144
      $region30: #{fcn_forward.1} parent=11 // pred_check_branch
        %199 = sbr.rel (%p197) target = $region32
      $region31: #{fcn_forward.1} parent=11 // pred_region
        _
      $region32: #{fcn_forward.1} parent=11 // pred_fallthru
        _
    $region12: #{fcn_forward.1} parent=5 // pred_fallthru
      _
    %p200 = scmp.lt.s32.totalorder %s13, 2
    // Predicated region
    $region33: #{fcn_forward.1} parent=5 // pred_check
      %p201 = pneg %p200
    $region34: #{fcn_forward.1} parent=5 // pred_check_branch
      %203 = sbr.rel (%p201) target = $region36
    $region35: #{fcn_forward.1} parent=5 // pred_region
      // Predicated region
      $region37: #{fcn_forward.1} parent=35 // pred_check
        %p204 = pneg %p33
      $region38: #{fcn_forward.1} parent=35 // pred_check_branch
        %206 = sbr.rel (%p204) target = $region40
      $region39: #{fcn_forward.1} parent=35 // pred_region
        %s207 = smul.u32 32, %s13
        %p208 = scmp.lt.s32.totalorder %s207, 63
        %s209 = scalar_select %p208, %s207, 63
        %s210 = smul.addr %s209, 8
        %s211 = scalar_lea.vmem %s0, %s210
        %s212 = smul.u32 32, %s13
      $region40: #{fcn_forward.1} parent=35 // pred_fallthru
        _
    $region36: #{fcn_forward.1} parent=5 // pred_fallthru
      _
    %p213 = scmp.le.s32.totalorder 1, %s13
    %p214 = scmp.lt.s32.totalorder %s13, 3
    %p215 = pnand %p213, %p214
    %p216 = pneg %p215
    // Predicated region
    $region41: #{fcn_forward.1} parent=5 // pred_check
      _
    $region42: #{fcn_forward.1} parent=5 // pred_check_branch
      %218 = sbr.rel (%p215) target = $region44
    $region43: #{fcn_forward.1} parent=5 // pred_region
      %s219 = ssub.s32 %s13, 1
      %s220 = smul.u32 32, %s18
      %p221 = scmp.lt.s32.totalorder %s220, 63
      %s222 = scalar_select %p221, %s220, 63
      %s223 = smul.addr %s222, 8
      %s224 = scalar_lea.vmem %s0, %s223
      %p225 = pneg %p39
      %p226 = pneg %p36
      %p227 = pneg %p60
      %p228 = pneg %p57
      %p229 = pneg %p81
      %p230 = pneg %p78
      %p231 = pneg %p102
      %p232 = pneg %p99
      %p233 = pneg %p123
      %p234 = pneg %p120
      %p235 = pneg %p144
      %p236 = pneg %p141
      %p237 = pneg %p170
      %p238 = pneg %p167
      %s239 = smul.u32 2, %s18
      %p240 = scmp.lt.s32.totalorder %s239, 3
      %s241 = scalar_select %p240, %s239, 3
      %s242 = smul.addr %s241, 8
      %s243 = scalar_lea.vmem %s6, %s242
      %s244 = smul.u32 32, %s18
      %p245 = scmp.lt.s32.totalorder %s244, 63
      %s246 = scalar_select %p245, %s244, 63
      %s247 = smul.addr %s246, 8
      %s248 = scalar_lea.vmem %s0, %s247
      %s249 = smul.u32 32, %s18
      %s250 = smul.u32 2, %s18
      %p251 = scmp.lt.s32.totalorder %s250, 3
      %s252 = scalar_select %p251, %s250, 3
      %s253 = smul.addr %s252, 8
      %s254 = scalar_lea.vmem %s6, %s253
      %s255 = smul.u32 2, %s18
      %v257 = vld [vmem:[%s248] sm:$0xff]
      %v258 = vld [vmem:[%s248 + $0x8] sm:$0xff]
      %v259 = vld [vmem:[%s248 + $0x10] sm:$0xff]
      %v260 = vld [vmem:[%s248 + $0x18] sm:$0xff]
      %v261 = vld [vmem:[%s248 + $0x20] sm:$0xff]
      %v262 = vld [vmem:[%s248 + $0x28] sm:$0xff]
      %v263 = vld [vmem:[%s248 + $0x30] sm:$0xff]
      %v264 = vld [vmem:[%s248 + $0x38] sm:$0xff]
      %v265 = vld [vmem:[%s248 + $0x40] sm:$0xff]
      %v266 = vld [vmem:[%s248 + $0x48] sm:$0xff]
      %v267 = vld [vmem:[%s248 + $0x50] sm:$0xff]
      %v268 = vld [vmem:[%s248 + $0x58] sm:$0xff]
      %v269 = vld [vmem:[%s248 + $0x60] sm:$0xff]
      %v270 = vld [vmem:[%s248 + $0x68] sm:$0xff]
      %v271 = vld [vmem:[%s248 + $0x70] sm:$0xff]
      %v272 = vld [vmem:[%s248 + $0x78] sm:$0xff]
      %v273 = vld [vmem:[%s248 + $0x80] sm:$0xff]
      %v274 = vld [vmem:[%s248 + $0x88] sm:$0xff]
      %v275 = vld [vmem:[%s248 + $0x90] sm:$0xff]
      %v276 = vld [vmem:[%s248 + $0x98] sm:$0xff]
      %v277 = vld [vmem:[%s248 + $0xa0] sm:$0xff]
      %v278 = vld [vmem:[%s248 + $0xa8] sm:$0xff]
      %v279 = vld [vmem:[%s248 + $0xb0] sm:$0xff]
      %v280 = vld [vmem:[%s248 + $0xb8] sm:$0xff]
      %v281 = vld [vmem:[%s248 + $0xc0] sm:$0xff]
      %v282 = vld [vmem:[%s248 + $0xc8] sm:$0xff]
      %v283 = vld [vmem:[%s248 + $0xd0] sm:$0xff]
      %v284 = vld [vmem:[%s248 + $0xd8] sm:$0xff]
      %v285 = vld [vmem:[%s248 + $0xe0] sm:$0xff]
      %v286 = vld [vmem:[%s248 + $0xe8] sm:$0xff]
      %v287 = vld [vmem:[%s248 + $0xf0] sm:$0xff]
      %v288 = vld [vmem:[%s248 + $0xf8] sm:$0xff]
      %v289 = vpack.c.bf16 %v258, %v257
      %v290 = vpack.c.bf16 %v260, %v259
      %v291 = vpack.c.bf16 %v262, %v261
      %v292 = vpack.c.bf16 %v264, %v263
      %v293 = vpack.c.bf16 %v266, %v265
      %v294 = vpack.c.bf16 %v268, %v267
      %v295 = vpack.c.bf16 %v270, %v269
      %v296 = vpack.c.bf16 %v272, %v271
      %v297 = vpack.c.bf16 %v274, %v273
      %v298 = vpack.c.bf16 %v276, %v275
      %v299 = vpack.c.bf16 %v278, %v277
      %v300 = vpack.c.bf16 %v280, %v279
      %v301 = vpack.c.bf16 %v282, %v281
      %v302 = vpack.c.bf16 %v284, %v283
      %v303 = vpack.c.bf16 %v286, %v285
      %v304 = vpack.c.bf16 %v288, %v287
      %v305 = vld [vmem:[%s1] sm:$0xf]
      %v306 = vld [vmem:[%s1 + $0x4] sm:$0xf]
      %v307 = vld [vmem:[%s3] sm:$0x1]
      %v308 = vlaneseq
      %v309 = vshrl.u32 %v308, 7
      %v310 = vsub.s32 0, %v309
      %v311 = vrot.slane %v307, %v310
      %v314 = vunpack.c.l.b16 %v305
      %v315 = vunpack.c.l.b16 %v306
      %v316 = vpack.c.b16 %v315, %v314
      %vm318 = vcmask 130048
      %v320 = vsel %vm318, %v289, 0
      %v323 = vsel %vm318, %v290, 0
      %v326 = vsel %vm318, %v291, 0
      %v329 = vsel %vm318, %v292, 0
      %v332 = vsel %vm318, %v293, 0
      %v335 = vsel %vm318, %v294, 0
      %v338 = vsel %vm318, %v295, 0
      %v341 = vsel %vm318, %v296, 0
      %v344 = vsel %vm318, %v297, 0
      %v347 = vsel %vm318, %v298, 0
      %v350 = vsel %vm318, %v299, 0
      %v353 = vsel %vm318, %v300, 0
      %v356 = vsel %vm318, %v301, 0
      %v359 = vsel %vm318, %v302, 0
      %v362 = vsel %vm318, %v303, 0
      %v365 = vsel %vm318, %v304, 0
      %367 = vmatprep.subr.bf16.mxu0 0
      %368 = vmatpush1.bf16.msra.mxu0 0
      %369 = vmatprep.subr.bf16.mxu0 0
      %370 = vmatpush1.bf16.msra.mxu0 0
      %371 = vmatprep.subr.bf16.mxu0 0
      %372 = vmatpush1.bf16.msra.mxu0 0
      %373 = vmatprep.subr.bf16.mxu0 0
      %374 = vmatpush1.bf16.msra.mxu0 0
      %375 = vmatprep.subr.bf16.mxu0 0
      %376 = vmatpush1.bf16.msra.mxu0 0
      %377 = vmatprep.subr.bf16.mxu0 0
      %378 = vmatpush1.bf16.msra.mxu0 0
      %379 = vmatprep.subr.bf16.mxu0 0
      %380 = vmatpush1.bf16.msra.mxu0 0
      %381 = vmatprep.subr.bf16.mxu0 0
      %382 = vmatpush1.bf16.msra.mxu0 %v316
      %383 = vmatprep.subr.bf16.mxu0 0
      %384 = vmatpush2.bf16.msra.mxu0 0
      %385 = vmatprep.subr.bf16.mxu0 0
      %386 = vmatpush2.bf16.msra.mxu0 0
      %387 = vmatprep.subr.bf16.mxu0 0
      %388 = vmatpush2.bf16.msra.mxu0 0
      %389 = vmatprep.subr.bf16.mxu0 0
      %390 = vmatpush2.bf16.msra.mxu0 0
      %391 = vmatprep.subr.bf16.mxu0 0
      %392 = vmatpush2.bf16.msra.mxu0 0
      %393 = vmatprep.subr.bf16.mxu0 0
      %394 = vmatpush2.bf16.msra.mxu0 0
      %395 = vmatprep.subr.bf16.mxu0 0
      %396 = vmatpush2.bf16.msra.mxu0 0
      %397 = vmatprep.subr.bf16.mxu0 0
      %398 = vmatpush2.bf16.msra.mxu0 0
      %399 = vmatprep.mubr.bf16.mxu0 0
      %400 = vmatmul.mubr.bf16.gmra.mxu0 %v320
      %v401 = vpop.f32.mrf.mxu0
      %v402 = vadd.f32 %v311, %v401
      %v403 = vpop.f32.mrf.mxu0
      %v404 = vpop.f32.mrf.mxu0
      %v405 = vadd.f32 %v311, %v404
      %v406 = vpop.f32.mrf.mxu0
      %407 = vmatprep.mubr.bf16.mxu0 0
      %408 = vmatmul.mubr.bf16.gmra.mxu0 %v323
      %v409 = vpop.f32.mrf.mxu0
      %v410 = vadd.f32 %v311, %v409
      %v411 = vpop.f32.mrf.mxu0
      %v412 = vpop.f32.mrf.mxu0
      %v413 = vadd.f32 %v311, %v412
      %v414 = vpop.f32.mrf.mxu0
      %415 = vmatprep.mubr.bf16.mxu0 0
      %416 = vmatmul.mubr.bf16.gmra.mxu0 %v326
      %v417 = vpop.f32.mrf.mxu0
      %v418 = vadd.f32 %v311, %v417
      %v419 = vpop.f32.mrf.mxu0
      %v420 = vpop.f32.mrf.mxu0
      %v421 = vadd.f32 %v311, %v420
      %v422 = vpop.f32.mrf.mxu0
      %423 = vmatprep.mubr.bf16.mxu0 0
      %424 = vmatmul.mubr.bf16.gmra.mxu0 %v329
      %v425 = vpop.f32.mrf.mxu0
      %v426 = vadd.f32 %v311, %v425
      %v427 = vpop.f32.mrf.mxu0
      %v428 = vpop.f32.mrf.mxu0
      %v429 = vadd.f32 %v311, %v428
      %v430 = vpop.f32.mrf.mxu0
      %431 = vmatprep.mubr.bf16.mxu0 0
      %432 = vmatmul.mubr.bf16.gmra.mxu0 %v332
      %v433 = vpop.f32.mrf.mxu0
      %v434 = vadd.f32 %v311, %v433
      %v435 = vpop.f32.mrf.mxu0
      %v436 = vpop.f32.mrf.mxu0
      %v437 = vadd.f32 %v311, %v436
      %v438 = vpop.f32.mrf.mxu0
      %439 = vmatprep.mubr.bf16.mxu0 0
      %440 = vmatmul.mubr.bf16.gmra.mxu0 %v335
      %v441 = vpop.f32.mrf.mxu0
      %v442 = vadd.f32 %v311, %v441
      %v443 = vpop.f32.mrf.mxu0
      %v444 = vpop.f32.mrf.mxu0
      %v445 = vadd.f32 %v311, %v444
      %v446 = vpop.f32.mrf.mxu0
      %447 = vmatprep.mubr.bf16.mxu0 0
      %448 = vmatmul.mubr.bf16.gmra.mxu0 %v338
      %v449 = vpop.f32.mrf.mxu0
      %v450 = vadd.f32 %v311, %v449
      %v451 = vpop.f32.mrf.mxu0
      %v452 = vpop.f32.mrf.mxu0
      %v453 = vadd.f32 %v311, %v452
      %v454 = vpop.f32.mrf.mxu0
      %455 = vmatprep.mubr.bf16.mxu0 0
      %456 = vmatmul.mubr.bf16.gmra.mxu0 %v341
      %v457 = vpop.f32.mrf.mxu0
      %v458 = vadd.f32 %v311, %v457
      %v459 = vpop.f32.mrf.mxu0
      %v460 = vpop.f32.mrf.mxu0
      %v461 = vadd.f32 %v311, %v460
      %v462 = vpop.f32.mrf.mxu0
      %463 = vmatprep.mubr.bf16.mxu0 0
      %464 = vmatmul.mubr.bf16.gmra.mxu0 %v344
      %v465 = vpop.f32.mrf.mxu0
      %v466 = vadd.f32 %v311, %v465
      %v467 = vpop.f32.mrf.mxu0
      %v468 = vpop.f32.mrf.mxu0
      %v469 = vadd.f32 %v311, %v468
      %v470 = vpop.f32.mrf.mxu0
      %471 = vmatprep.mubr.bf16.mxu0 0
      %472 = vmatmul.mubr.bf16.gmra.mxu0 %v347
      %v473 = vpop.f32.mrf.mxu0
      %v474 = vadd.f32 %v311, %v473
      %v475 = vpop.f32.mrf.mxu0
      %v476 = vpop.f32.mrf.mxu0
      %v477 = vadd.f32 %v311, %v476
      %v478 = vpop.f32.mrf.mxu0
      %479 = vmatprep.mubr.bf16.mxu0 0
      %480 = vmatmul.mubr.bf16.gmra.mxu0 %v350
      %v481 = vpop.f32.mrf.mxu0
      %v482 = vadd.f32 %v311, %v481
      %v483 = vpop.f32.mrf.mxu0
      %v484 = vpop.f32.mrf.mxu0
      %v485 = vadd.f32 %v311, %v484
      %v486 = vpop.f32.mrf.mxu0
      %487 = vmatprep.mubr.bf16.mxu0 0
      %488 = vmatmul.mubr.bf16.gmra.mxu0 %v353
      %v489 = vpop.f32.mrf.mxu0
      %v490 = vadd.f32 %v311, %v489
      %v491 = vpop.f32.mrf.mxu0
      %v492 = vpop.f32.mrf.mxu0
      %v493 = vadd.f32 %v311, %v492
      %v494 = vpop.f32.mrf.mxu0
      %495 = vmatprep.mubr.bf16.mxu0 0
      %496 = vmatmul.mubr.bf16.gmra.mxu0 %v356
      %v497 = vpop.f32.mrf.mxu0
      %v498 = vadd.f32 %v311, %v497
      %v499 = vpop.f32.mrf.mxu0
      %v500 = vpop.f32.mrf.mxu0
      %v501 = vadd.f32 %v311, %v500
      %v502 = vpop.f32.mrf.mxu0
      %503 = vmatprep.mubr.bf16.mxu0 0
      %504 = vmatmul.mubr.bf16.gmra.mxu0 %v359
      %v505 = vpop.f32.mrf.mxu0
      %v506 = vadd.f32 %v311, %v505
      %v507 = vpop.f32.mrf.mxu0
      %v508 = vpop.f32.mrf.mxu0
      %v509 = vadd.f32 %v311, %v508
      %v510 = vpop.f32.mrf.mxu0
      %511 = vmatprep.mubr.bf16.mxu0 0
      %512 = vmatmul.mubr.bf16.gmra.mxu0 %v362
      %v513 = vpop.f32.mrf.mxu0
      %v514 = vadd.f32 %v311, %v513
      %v515 = vpop.f32.mrf.mxu0
      %v516 = vpop.f32.mrf.mxu0
      %v517 = vadd.f32 %v311, %v516
      %v518 = vpop.f32.mrf.mxu0
      %519 = vmatprep.mubr.bf16.mxu0 0
      %520 = vmatmul.mubr.bf16.gmra.mxu0 %v365
      %v521 = vpop.f32.mrf.mxu0
      %v522 = vadd.f32 %v311, %v521
      %v523 = vpop.f32.mrf.mxu0
      %v524 = vpop.f32.mrf.mxu0
      %v525 = vadd.f32 %v311, %v524
      %v526 = vpop.f32.mrf.mxu0
      %527 = vdwg.mxu0
      %v528 = vmax.f32 %v402, 0.0
      %v529 = vmax.f32 %v405, 0.0
      %v530 = vmax.f32 %v410, 0.0
      %v531 = vmax.f32 %v413, 0.0
      %v532 = vmax.f32 %v418, 0.0
      %v533 = vmax.f32 %v421, 0.0
      %v534 = vmax.f32 %v426, 0.0
      %v535 = vmax.f32 %v429, 0.0
      %v536 = vmax.f32 %v434, 0.0
      %v537 = vmax.f32 %v437, 0.0
      %v538 = vmax.f32 %v442, 0.0
      %v539 = vmax.f32 %v445, 0.0
      %v540 = vmax.f32 %v450, 0.0
      %v541 = vmax.f32 %v453, 0.0
      %v542 = vmax.f32 %v458, 0.0
      %v543 = vmax.f32 %v461, 0.0
      %v544 = vmax.f32 %v466, 0.0
      %v545 = vmax.f32 %v469, 0.0
      %v546 = vmax.f32 %v474, 0.0
      %v547 = vmax.f32 %v477, 0.0
      %v548 = vmax.f32 %v482, 0.0
      %v549 = vmax.f32 %v485, 0.0
      %v550 = vmax.f32 %v490, 0.0
      %v551 = vmax.f32 %v493, 0.0
      %v552 = vmax.f32 %v498, 0.0
      %v553 = vmax.f32 %v501, 0.0
      %v554 = vmax.f32 %v506, 0.0
      %v555 = vmax.f32 %v509, 0.0
      %v556 = vmax.f32 %v514, 0.0
      %v557 = vmax.f32 %v517, 0.0
      %v558 = vmax.f32 %v522, 0.0
      %v559 = vmax.f32 %v525, 0.0
      %v560 = vpack.c.bf16 %v529, %v528
      %v561 = vpack.c.bf16 %v531, %v530
      %v562 = vpack.c.bf16 %v533, %v532
      %v563 = vpack.c.bf16 %v535, %v534
      %v564 = vpack.c.bf16 %v537, %v536
      %v565 = vpack.c.bf16 %v539, %v538
      %v566 = vpack.c.bf16 %v541, %v540
      %v567 = vpack.c.bf16 %v543, %v542
      %v568 = vpack.c.bf16 %v545, %v544
      %v569 = vpack.c.bf16 %v547, %v546
      %v570 = vpack.c.bf16 %v549, %v548
      %v571 = vpack.c.bf16 %v551, %v550
      %v572 = vpack.c.bf16 %v553, %v552
      %v573 = vpack.c.bf16 %v555, %v554
      %v574 = vpack.c.bf16 %v557, %v556
      %v575 = vpack.c.bf16 %v559, %v558
      %v576 = vld [vmem:[%s2] sm:$0xf]
      %v577 = vld [vmem:[%s2 + $0x4] sm:$0xf]
      %v578 = vld [vmem:[%s2 + $0x8] sm:$0xf]
      %v579 = vld [vmem:[%s2 + $0xc] sm:$0xf]
      %v580 = vld [vmem:[%s2 + $0x10] sm:$0xf]
      %v581 = vld [vmem:[%s2 + $0x14] sm:$0xf]
      %v582 = vld [vmem:[%s2 + $0x18] sm:$0xf]
      %v583 = vld [vmem:[%s2 + $0x1c] sm:$0xf]
      %v584 = vld [vmem:[%s2 + $0x20] sm:$0xf]
      %v585 = vld [vmem:[%s2 + $0x24] sm:$0xf]
      %v586 = vld [vmem:[%s2 + $0x28] sm:$0xf]
      %v587 = vld [vmem:[%s2 + $0x2c] sm:$0xf]
      %v588 = vld [vmem:[%s2 + $0x30] sm:$0xf]
      %v589 = vld [vmem:[%s2 + $0x34] sm:$0xf]
      %v590 = vld [vmem:[%s2 + $0x38] sm:$0xf]
      %v591 = vld [vmem:[%s2 + $0x3c] sm:$0xf]
      %v592 = vld [vmem:[%s3 + $0x1] sm:$0x1]
      %v593 = vlaneseq
      %v594 = vshrl.u32 %v593, 7
      %v595 = vsub.s32 0, %v594
      %v596 = vrot.slane %v592, %v595
      %v613 = vunpack.c.l.b16 %v576
      %v614 = vunpack.c.l.b16 %v577
      %v615 = vunpack.c.l.b16 %v578
      %v616 = vunpack.c.l.b16 %v579
      %v617 = vunpack.c.l.b16 %v580
      %v618 = vunpack.c.l.b16 %v581
      %v619 = vunpack.c.l.b16 %v582
      %v620 = vunpack.c.l.b16 %v583
      %v621 = vunpack.c.l.b16 %v584
      %v622 = vunpack.c.l.b16 %v585
      %v623 = vunpack.c.l.b16 %v586
      %v624 = vunpack.c.l.b16 %v587
      %v625 = vunpack.c.l.b16 %v588
      %v626 = vunpack.c.l.b16 %v589
      %v627 = vunpack.c.l.b16 %v590
      %v628 = vunpack.c.l.b16 %v591
      %v629 = vpack.c.b16 %v614, %v613
      %v630 = vpack.c.b16 %v616, %v615
      %v631 = vpack.c.b16 %v618, %v617
      %v632 = vpack.c.b16 %v620, %v619
      %v633 = vpack.c.b16 %v622, %v621
      %v634 = vpack.c.b16 %v624, %v623
      %v635 = vpack.c.b16 %v626, %v625
      %v636 = vpack.c.b16 %v628, %v627
      %645 = vmatprep.subr.bf16.mxu0 0
      %646 = vmatpush1.bf16.msra.mxu0 %v636
      %647 = vmatprep.subr.bf16.mxu0 0
      %648 = vmatpush1.bf16.msra.mxu0 %v635
      %649 = vmatprep.subr.bf16.mxu0 0
      %650 = vmatpush1.bf16.msra.mxu0 %v634
      %651 = vmatprep.subr.bf16.mxu0 0
      %652 = vmatpush1.bf16.msra.mxu0 %v633
      %653 = vmatprep.subr.bf16.mxu0 0
      %654 = vmatpush1.bf16.msra.mxu0 %v632
      %655 = vmatprep.subr.bf16.mxu0 0
      %656 = vmatpush1.bf16.msra.mxu0 %v631
      %657 = vmatprep.subr.bf16.mxu0 0
      %658 = vmatpush1.bf16.msra.mxu0 %v630
      %659 = vmatprep.subr.bf16.mxu0 0
      %660 = vmatpush1.bf16.msra.mxu0 %v629
      %661 = vmatprep.subr.bf16.mxu0 0
      %662 = vmatpush2.bf16.msra.mxu0 0
      %663 = vmatprep.subr.bf16.mxu0 0
      %664 = vmatpush2.bf16.msra.mxu0 0
      %665 = vmatprep.subr.bf16.mxu0 0
      %666 = vmatpush2.bf16.msra.mxu0 0
      %667 = vmatprep.subr.bf16.mxu0 0
      %668 = vmatpush2.bf16.msra.mxu0 0
      %669 = vmatprep.subr.bf16.mxu0 0
      %670 = vmatpush2.bf16.msra.mxu0 0
      %671 = vmatprep.subr.bf16.mxu0 0
      %672 = vmatpush2.bf16.msra.mxu0 0
      %673 = vmatprep.subr.bf16.mxu0 0
      %674 = vmatpush2.bf16.msra.mxu0 0
      %675 = vmatprep.subr.bf16.mxu0 0
      %676 = vmatpush2.bf16.msra.mxu0 0
      %677 = vmatprep.mubr.bf16.mxu0 0
      %678 = vmatmul.mubr.bf16.gmra.mxu0 %v560
      %v679 = vpop.f32.mrf.mxu0
      %v680 = vadd.f32 %v596, %v679
      %v681 = vpop.f32.mrf.mxu0
      %v682 = vpop.f32.mrf.mxu0
      %v683 = vadd.f32 %v596, %v682
      %v684 = vpop.f32.mrf.mxu0
      %685 = vmatprep.mubr.bf16.mxu0 0
      %686 = vmatmul.mubr.bf16.gmra.mxu0 %v561
      %v687 = vpop.f32.mrf.mxu0
      %v688 = vadd.f32 %v596, %v687
      %v689 = vpop.f32.mrf.mxu0
      %v690 = vpop.f32.mrf.mxu0
      %v691 = vadd.f32 %v596, %v690
      %v692 = vpop.f32.mrf.mxu0
      %693 = vmatprep.mubr.bf16.mxu0 0
      %694 = vmatmul.mubr.bf16.gmra.mxu0 %v562
      %v695 = vpop.f32.mrf.mxu0
      %v696 = vadd.f32 %v596, %v695
      %v697 = vpop.f32.mrf.mxu0
      %v698 = vpop.f32.mrf.mxu0
      %v699 = vadd.f32 %v596, %v698
      %v700 = vpop.f32.mrf.mxu0
      %701 = vmatprep.mubr.bf16.mxu0 0
      %702 = vmatmul.mubr.bf16.gmra.mxu0 %v563
      %v703 = vpop.f32.mrf.mxu0
      %v704 = vadd.f32 %v596, %v703
      %v705 = vpop.f32.mrf.mxu0
      %v706 = vpop.f32.mrf.mxu0
      %v707 = vadd.f32 %v596, %v706
      %v708 = vpop.f32.mrf.mxu0
      %709 = vmatprep.mubr.bf16.mxu0 0
      %710 = vmatmul.mubr.bf16.gmra.mxu0 %v564
      %v711 = vpop.f32.mrf.mxu0
      %v712 = vadd.f32 %v596, %v711
      %v713 = vpop.f32.mrf.mxu0
      %v714 = vpop.f32.mrf.mxu0
      %v715 = vadd.f32 %v596, %v714
      %v716 = vpop.f32.mrf.mxu0
      %717 = vmatprep.mubr.bf16.mxu0 0
      %718 = vmatmul.mubr.bf16.gmra.mxu0 %v565
      %v719 = vpop.f32.mrf.mxu0
      %v720 = vadd.f32 %v596, %v719
      %v721 = vpop.f32.mrf.mxu0
      %v722 = vpop.f32.mrf.mxu0
      %v723 = vadd.f32 %v596, %v722
      %v724 = vpop.f32.mrf.mxu0
      %725 = vmatprep.mubr.bf16.mxu0 0
      %726 = vmatmul.mubr.bf16.gmra.mxu0 %v566
      %v727 = vpop.f32.mrf.mxu0
      %v728 = vadd.f32 %v596, %v727
      %v729 = vpop.f32.mrf.mxu0
      %v730 = vpop.f32.mrf.mxu0
      %v731 = vadd.f32 %v596, %v730
      %v732 = vpop.f32.mrf.mxu0
      %733 = vmatprep.mubr.bf16.mxu0 0
      %734 = vmatmul.mubr.bf16.gmra.mxu0 %v567
      %v735 = vpop.f32.mrf.mxu0
      %v736 = vadd.f32 %v596, %v735
      %v737 = vpop.f32.mrf.mxu0
      %v738 = vpop.f32.mrf.mxu0
      %v739 = vadd.f32 %v596, %v738
      %v740 = vpop.f32.mrf.mxu0
      %741 = vmatprep.mubr.bf16.mxu0 0
      %742 = vmatmul.mubr.bf16.gmra.mxu0 %v568
      %v743 = vpop.f32.mrf.mxu0
      %v744 = vadd.f32 %v596, %v743
      %v745 = vpop.f32.mrf.mxu0
      %v746 = vpop.f32.mrf.mxu0
      %v747 = vadd.f32 %v596, %v746
      %v748 = vpop.f32.mrf.mxu0
      %749 = vmatprep.mubr.bf16.mxu0 0
      %750 = vmatmul.mubr.bf16.gmra.mxu0 %v569
      %v751 = vpop.f32.mrf.mxu0
      %v752 = vadd.f32 %v596, %v751
      %v753 = vpop.f32.mrf.mxu0
      %v754 = vpop.f32.mrf.mxu0
      %v755 = vadd.f32 %v596, %v754
      %v756 = vpop.f32.mrf.mxu0
      %757 = vmatprep.mubr.bf16.mxu0 0
      %758 = vmatmul.mubr.bf16.gmra.mxu0 %v570
      %v759 = vpop.f32.mrf.mxu0
      %v760 = vadd.f32 %v596, %v759
      %v761 = vpop.f32.mrf.mxu0
      %v762 = vpop.f32.mrf.mxu0
      %v763 = vadd.f32 %v596, %v762
      %v764 = vpop.f32.mrf.mxu0
      %765 = vmatprep.mubr.bf16.mxu0 0
      %766 = vmatmul.mubr.bf16.gmra.mxu0 %v571
      %v767 = vpop.f32.mrf.mxu0
      %v768 = vadd.f32 %v596, %v767
      %v769 = vpop.f32.mrf.mxu0
      %v770 = vpop.f32.mrf.mxu0
      %v771 = vadd.f32 %v596, %v770
      %v772 = vpop.f32.mrf.mxu0
      %773 = vmatprep.mubr.bf16.mxu0 0
      %774 = vmatmul.mubr.bf16.gmra.mxu0 %v572
      %v775 = vpop.f32.mrf.mxu0
      %v776 = vadd.f32 %v596, %v775
      %v777 = vpop.f32.mrf.mxu0
      %v778 = vpop.f32.mrf.mxu0
      %v779 = vadd.f32 %v596, %v778
      %v780 = vpop.f32.mrf.mxu0
      %781 = vmatprep.mubr.bf16.mxu0 0
      %782 = vmatmul.mubr.bf16.gmra.mxu0 %v573
      %v783 = vpop.f32.mrf.mxu0
      %v784 = vadd.f32 %v596, %v783
      %v785 = vpop.f32.mrf.mxu0
      %v786 = vpop.f32.mrf.mxu0
      %v787 = vadd.f32 %v596, %v786
      %v788 = vpop.f32.mrf.mxu0
      %789 = vmatprep.mubr.bf16.mxu0 0
      %790 = vmatmul.mubr.bf16.gmra.mxu0 %v574
      %v791 = vpop.f32.mrf.mxu0
      %v792 = vadd.f32 %v596, %v791
      %v793 = vpop.f32.mrf.mxu0
      %v794 = vpop.f32.mrf.mxu0
      %v795 = vadd.f32 %v596, %v794
      %v796 = vpop.f32.mrf.mxu0
      %797 = vmatprep.mubr.bf16.mxu0 0
      %798 = vmatmul.mubr.bf16.gmra.mxu0 %v575
      %v799 = vpop.f32.mrf.mxu0
      %v800 = vadd.f32 %v596, %v799
      %v801 = vpop.f32.mrf.mxu0
      %v802 = vpop.f32.mrf.mxu0
      %v803 = vadd.f32 %v596, %v802
      %v804 = vpop.f32.mrf.mxu0
      %805 = vdwg.mxu0
      %v806 = vmax.f32 %v680, 0.0
      %v807 = vmax.f32 %v683, 0.0
      %v808 = vmax.f32 %v688, 0.0
      %v809 = vmax.f32 %v691, 0.0
      %v810 = vmax.f32 %v696, 0.0
      %v811 = vmax.f32 %v699, 0.0
      %v812 = vmax.f32 %v704, 0.0
      %v813 = vmax.f32 %v707, 0.0
      %v814 = vmax.f32 %v712, 0.0
      %v815 = vmax.f32 %v715, 0.0
      %v816 = vmax.f32 %v720, 0.0
      %v817 = vmax.f32 %v723, 0.0
      %v818 = vmax.f32 %v728, 0.0
      %v819 = vmax.f32 %v731, 0.0
      %v820 = vmax.f32 %v736, 0.0
      %v821 = vmax.f32 %v739, 0.0
      %v822 = vmax.f32 %v744, 0.0
      %v823 = vmax.f32 %v747, 0.0
      %v824 = vmax.f32 %v752, 0.0
      %v825 = vmax.f32 %v755, 0.0
      %v826 = vmax.f32 %v760, 0.0
      %v827 = vmax.f32 %v763, 0.0
      %v828 = vmax.f32 %v768, 0.0
      %v829 = vmax.f32 %v771, 0.0
      %v830 = vmax.f32 %v776, 0.0
      %v831 = vmax.f32 %v779, 0.0
      %v832 = vmax.f32 %v784, 0.0
      %v833 = vmax.f32 %v787, 0.0
      %v834 = vmax.f32 %v792, 0.0
      %v835 = vmax.f32 %v795, 0.0
      %v836 = vmax.f32 %v800, 0.0
      %v837 = vmax.f32 %v803, 0.0
      %v838 = vpack.c.bf16 %v807, %v806
      %v839 = vpack.c.bf16 %v809, %v808
      %v840 = vpack.c.bf16 %v811, %v810
      %v841 = vpack.c.bf16 %v813, %v812
      %v842 = vpack.c.bf16 %v815, %v814
      %v843 = vpack.c.bf16 %v817, %v816
      %v844 = vpack.c.bf16 %v819, %v818
      %v845 = vpack.c.bf16 %v821, %v820
      %v846 = vpack.c.bf16 %v823, %v822
      %v847 = vpack.c.bf16 %v825, %v824
      %v848 = vpack.c.bf16 %v827, %v826
      %v849 = vpack.c.bf16 %v829, %v828
      %v850 = vpack.c.bf16 %v831, %v830
      %v851 = vpack.c.bf16 %v833, %v832
      %v852 = vpack.c.bf16 %v835, %v834
      %v853 = vpack.c.bf16 %v837, %v836
      %s854 = scalar_lea.vmem %s2, 64
      %v855 = vld [vmem:[%s854] sm:$0xf]
      %v856 = vld [vmem:[%s854 + $0x4] sm:$0xf]
      %v857 = vld [vmem:[%s854 + $0x8] sm:$0xf]
      %v858 = vld [vmem:[%s854 + $0xc] sm:$0xf]
      %v859 = vld [vmem:[%s854 + $0x10] sm:$0xf]
      %v860 = vld [vmem:[%s854 + $0x14] sm:$0xf]
      %v861 = vld [vmem:[%s854 + $0x18] sm:$0xf]
      %v862 = vld [vmem:[%s854 + $0x1c] sm:$0xf]
      %v863 = vld [vmem:[%s854 + $0x20] sm:$0xf]
      %v864 = vld [vmem:[%s854 + $0x24] sm:$0xf]
      %v865 = vld [vmem:[%s854 + $0x28] sm:$0xf]
      %v866 = vld [vmem:[%s854 + $0x2c] sm:$0xf]
      %v867 = vld [vmem:[%s854 + $0x30] sm:$0xf]
      %v868 = vld [vmem:[%s854 + $0x34] sm:$0xf]
      %v869 = vld [vmem:[%s854 + $0x38] sm:$0xf]
      %v870 = vld [vmem:[%s854 + $0x3c] sm:$0xf]
      %v871 = vld [vmem:[%s3 + $0x2] sm:$0x1]
      %v872 = vlaneseq
      %v873 = vshrl.u32 %v872, 7
      %v874 = vsub.s32 0, %v873
      %v875 = vrot.slane %v871, %v874
      %v892 = vunpack.c.l.b16 %v855
      %v893 = vunpack.c.l.b16 %v856
      %v894 = vunpack.c.l.b16 %v857
      %v895 = vunpack.c.l.b16 %v858
      %v896 = vunpack.c.l.b16 %v859
      %v897 = vunpack.c.l.b16 %v860
      %v898 = vunpack.c.l.b16 %v861
      %v899 = vunpack.c.l.b16 %v862
      %v900 = vunpack.c.l.b16 %v863
      %v901 = vunpack.c.l.b16 %v864
      %v902 = vunpack.c.l.b16 %v865
      %v903 = vunpack.c.l.b16 %v866
      %v904 = vunpack.c.l.b16 %v867
      %v905 = vunpack.c.l.b16 %v868
      %v906 = vunpack.c.l.b16 %v869
      %v907 = vunpack.c.l.b16 %v870
      %v908 = vpack.c.b16 %v893, %v892
      %v909 = vpack.c.b16 %v895, %v894
      %v910 = vpack.c.b16 %v897, %v896
      %v911 = vpack.c.b16 %v899, %v898
      %v912 = vpack.c.b16 %v901, %v900
      %v913 = vpack.c.b16 %v903, %v902
      %v914 = vpack.c.b16 %v905, %v904
      %v915 = vpack.c.b16 %v907, %v906
      %924 = vmatprep.subr.bf16.mxu0 0
      %925 = vmatpush1.bf16.msra.mxu0 %v915
      %926 = vmatprep.subr.bf16.mxu0 0
      %927 = vmatpush1.bf16.msra.mxu0 %v914
      %928 = vmatprep.subr.bf16.mxu0 0
      %929 = vmatpush1.bf16.msra.mxu0 %v913
      %930 = vmatprep.subr.bf16.mxu0 0
      %931 = vmatpush1.bf16.msra.mxu0 %v912
      %932 = vmatprep.subr.bf16.mxu0 0
      %933 = vmatpush1.bf16.msra.mxu0 %v911
      %934 = vmatprep.subr.bf16.mxu0 0
      %935 = vmatpush1.bf16.msra.mxu0 %v910
      %936 = vmatprep.subr.bf16.mxu0 0
      %937 = vmatpush1.bf16.msra.mxu0 %v909
      %938 = vmatprep.subr.bf16.mxu0 0
      %939 = vmatpush1.bf16.msra.mxu0 %v908
      %940 = vmatprep.subr.bf16.mxu0 0
      %941 = vmatpush2.bf16.msra.mxu0 0
      %942 = vmatprep.subr.bf16.mxu0 0
      %943 = vmatpush2.bf16.msra.mxu0 0
      %944 = vmatprep.subr.bf16.mxu0 0
      %945 = vmatpush2.bf16.msra.mxu0 0
      %946 = vmatprep.subr.bf16.mxu0 0
      %947 = vmatpush2.bf16.msra.mxu0 0
      %948 = vmatprep.subr.bf16.mxu0 0
      %949 = vmatpush2.bf16.msra.mxu0 0
      %950 = vmatprep.subr.bf16.mxu0 0
      %951 = vmatpush2.bf16.msra.mxu0 0
      %952 = vmatprep.subr.bf16.mxu0 0
      %953 = vmatpush2.bf16.msra.mxu0 0
      %954 = vmatprep.subr.bf16.mxu0 0
      %955 = vmatpush2.bf16.msra.mxu0 0
      %956 = vmatprep.mubr.bf16.mxu0 0
      %957 = vmatmul.mubr.bf16.gmra.mxu0 %v838
      %v958 = vpop.f32.mrf.mxu0
      %v959 = vadd.f32 %v875, %v958
      %v960 = vpop.f32.mrf.mxu0
      %v961 = vpop.f32.mrf.mxu0
      %v962 = vadd.f32 %v875, %v961
      %v963 = vpop.f32.mrf.mxu0
      %964 = vmatprep.mubr.bf16.mxu0 0
      %965 = vmatmul.mubr.bf16.gmra.mxu0 %v839
      %v966 = vpop.f32.mrf.mxu0
      %v967 = vadd.f32 %v875, %v966
      %v968 = vpop.f32.mrf.mxu0
      %v969 = vpop.f32.mrf.mxu0
      %v970 = vadd.f32 %v875, %v969
      %v971 = vpop.f32.mrf.mxu0
      %972 = vmatprep.mubr.bf16.mxu0 0
      %973 = vmatmul.mubr.bf16.gmra.mxu0 %v840
      %v974 = vpop.f32.mrf.mxu0
      %v975 = vadd.f32 %v875, %v974
      %v976 = vpop.f32.mrf.mxu0
      %v977 = vpop.f32.mrf.mxu0
      %v978 = vadd.f32 %v875, %v977
      %v979 = vpop.f32.mrf.mxu0
      %980 = vmatprep.mubr.bf16.mxu0 0
      %981 = vmatmul.mubr.bf16.gmra.mxu0 %v841
      %v982 = vpop.f32.mrf.mxu0
      %v983 = vadd.f32 %v875, %v982
      %v984 = vpop.f32.mrf.mxu0
      %v985 = vpop.f32.mrf.mxu0
      %v986 = vadd.f32 %v875, %v985
      %v987 = vpop.f32.mrf.mxu0
      %988 = vmatprep.mubr.bf16.mxu0 0
      %989 = vmatmul.mubr.bf16.gmra.mxu0 %v842
      %v990 = vpop.f32.mrf.mxu0
      %v991 = vadd.f32 %v875, %v990
      %v992 = vpop.f32.mrf.mxu0
      %v993 = vpop.f32.mrf.mxu0
      %v994 = vadd.f32 %v875, %v993
      %v995 = vpop.f32.mrf.mxu0
      %996 = vmatprep.mubr.bf16.mxu0 0
      %997 = vmatmul.mubr.bf16.gmra.mxu0 %v843
      %v998 = vpop.f32.mrf.mxu0
      %v999 = vadd.f32 %v875, %v998
      %v1000 = vpop.f32.mrf.mxu0
      %v1001 = vpop.f32.mrf.mxu0
      %v1002 = vadd.f32 %v875, %v1001
      %v1003 = vpop.f32.mrf.mxu0
      %1004 = vmatprep.mubr.bf16.mxu0 0
      %1005 = vmatmul.mubr.bf16.gmra.mxu0 %v844
      %v1006 = vpop.f32.mrf.mxu0
      %v1007 = vadd.f32 %v875, %v1006
      %v1008 = vpop.f32.mrf.mxu0
      %v1009 = vpop.f32.mrf.mxu0
      %v1010 = vadd.f32 %v875, %v1009
      %v1011 = vpop.f32.mrf.mxu0
      %1012 = vmatprep.mubr.bf16.mxu0 0
      %1013 = vmatmul.mubr.bf16.gmra.mxu0 %v845
      %v1014 = vpop.f32.mrf.mxu0
      %v1015 = vadd.f32 %v875, %v1014
      %v1016 = vpop.f32.mrf.mxu0
      %v1017 = vpop.f32.mrf.mxu0
      %v1018 = vadd.f32 %v875, %v1017
      %v1019 = vpop.f32.mrf.mxu0
      %1020 = vmatprep.mubr.bf16.mxu0 0
      %1021 = vmatmul.mubr.bf16.gmra.mxu0 %v846
      %v1022 = vpop.f32.mrf.mxu0
      %v1023 = vadd.f32 %v875, %v1022
      %v1024 = vpop.f32.mrf.mxu0
      %v1025 = vpop.f32.mrf.mxu0
      %v1026 = vadd.f32 %v875, %v1025
      %v1027 = vpop.f32.mrf.mxu0
      %1028 = vmatprep.mubr.bf16.mxu0 0
      %1029 = vmatmul.mubr.bf16.gmra.mxu0 %v847
      %v1030 = vpop.f32.mrf.mxu0
      %v1031 = vadd.f32 %v875, %v1030
      %v1032 = vpop.f32.mrf.mxu0
      %v1033 = vpop.f32.mrf.mxu0
      %v1034 = vadd.f32 %v875, %v1033
      %v1035 = vpop.f32.mrf.mxu0
      %1036 = vmatprep.mubr.bf16.mxu0 0
      %1037 = vmatmul.mubr.bf16.gmra.mxu0 %v848
      %v1038 = vpop.f32.mrf.mxu0
      %v1039 = vadd.f32 %v875, %v1038
      %v1040 = vpop.f32.mrf.mxu0
      %v1041 = vpop.f32.mrf.mxu0
      %v1042 = vadd.f32 %v875, %v1041
      %v1043 = vpop.f32.mrf.mxu0
      %1044 = vmatprep.mubr.bf16.mxu0 0
      %1045 = vmatmul.mubr.bf16.gmra.mxu0 %v849
      %v1046 = vpop.f32.mrf.mxu0
      %v1047 = vadd.f32 %v875, %v1046
      %v1048 = vpop.f32.mrf.mxu0
      %v1049 = vpop.f32.mrf.mxu0
      %v1050 = vadd.f32 %v875, %v1049
      %v1051 = vpop.f32.mrf.mxu0
      %1052 = vmatprep.mubr.bf16.mxu0 0
      %1053 = vmatmul.mubr.bf16.gmra.mxu0 %v850
      %v1054 = vpop.f32.mrf.mxu0
      %v1055 = vadd.f32 %v875, %v1054
      %v1056 = vpop.f32.mrf.mxu0
      %v1057 = vpop.f32.mrf.mxu0
      %v1058 = vadd.f32 %v875, %v1057
      %v1059 = vpop.f32.mrf.mxu0
      %1060 = vmatprep.mubr.bf16.mxu0 0
      %1061 = vmatmul.mubr.bf16.gmra.mxu0 %v851
      %v1062 = vpop.f32.mrf.mxu0
      %v1063 = vadd.f32 %v875, %v1062
      %v1064 = vpop.f32.mrf.mxu0
      %v1065 = vpop.f32.mrf.mxu0
      %v1066 = vadd.f32 %v875, %v1065
      %v1067 = vpop.f32.mrf.mxu0
      %1068 = vmatprep.mubr.bf16.mxu0 0
      %1069 = vmatmul.mubr.bf16.gmra.mxu0 %v852
      %v1070 = vpop.f32.mrf.mxu0
      %v1071 = vadd.f32 %v875, %v1070
      %v1072 = vpop.f32.mrf.mxu0
      %v1073 = vpop.f32.mrf.mxu0
      %v1074 = vadd.f32 %v875, %v1073
      %v1075 = vpop.f32.mrf.mxu0
      %1076 = vmatprep.mubr.bf16.mxu0 0
      %1077 = vmatmul.mubr.bf16.gmra.mxu0 %v853
      %v1078 = vpop.f32.mrf.mxu0
      %v1079 = vadd.f32 %v875, %v1078
      %v1080 = vpop.f32.mrf.mxu0
      %v1081 = vpop.f32.mrf.mxu0
      %v1082 = vadd.f32 %v875, %v1081
      %v1083 = vpop.f32.mrf.mxu0
      %1084 = vdwg.mxu0
      %v1085 = vmax.f32 %v959, 0.0
      %v1086 = vmax.f32 %v962, 0.0
      %v1087 = vmax.f32 %v967, 0.0
      %v1088 = vmax.f32 %v970, 0.0
      %v1089 = vmax.f32 %v975, 0.0
      %v1090 = vmax.f32 %v978, 0.0
      %v1091 = vmax.f32 %v983, 0.0
      %v1092 = vmax.f32 %v986, 0.0
      %v1093 = vmax.f32 %v991, 0.0
      %v1094 = vmax.f32 %v994, 0.0
      %v1095 = vmax.f32 %v999, 0.0
      %v1096 = vmax.f32 %v1002, 0.0
      %v1097 = vmax.f32 %v1007, 0.0
      %v1098 = vmax.f32 %v1010, 0.0
      %v1099 = vmax.f32 %v1015, 0.0
      %v1100 = vmax.f32 %v1018, 0.0
      %v1101 = vmax.f32 %v1023, 0.0
      %v1102 = vmax.f32 %v1026, 0.0
      %v1103 = vmax.f32 %v1031, 0.0
      %v1104 = vmax.f32 %v1034, 0.0
      %v1105 = vmax.f32 %v1039, 0.0
      %v1106 = vmax.f32 %v1042, 0.0
      %v1107 = vmax.f32 %v1047, 0.0
      %v1108 = vmax.f32 %v1050, 0.0
      %v1109 = vmax.f32 %v1055, 0.0
      %v1110 = vmax.f32 %v1058, 0.0
      %v1111 = vmax.f32 %v1063, 0.0
      %v1112 = vmax.f32 %v1066, 0.0
      %v1113 = vmax.f32 %v1071, 0.0
      %v1114 = vmax.f32 %v1074, 0.0
      %v1115 = vmax.f32 %v1079, 0.0
      %v1116 = vmax.f32 %v1082, 0.0
      %v1117 = vpack.c.bf16 %v1086, %v1085
      %v1118 = vpack.c.bf16 %v1088, %v1087
      %v1119 = vpack.c.bf16 %v1090, %v1089
      %v1120 = vpack.c.bf16 %v1092, %v1091
      %v1121 = vpack.c.bf16 %v1094, %v1093
      %v1122 = vpack.c.bf16 %v1096, %v1095
      %v1123 = vpack.c.bf16 %v1098, %v1097
      %v1124 = vpack.c.bf16 %v1100, %v1099
      %v1125 = vpack.c.bf16 %v1102, %v1101
      %v1126 = vpack.c.bf16 %v1104, %v1103
      %v1127 = vpack.c.bf16 %v1106, %v1105
      %v1128 = vpack.c.bf16 %v1108, %v1107
      %v1129 = vpack.c.bf16 %v1110, %v1109
      %v1130 = vpack.c.bf16 %v1112, %v1111
      %v1131 = vpack.c.bf16 %v1114, %v1113
      %v1132 = vpack.c.bf16 %v1116, %v1115
      %v1133 = vld [vmem:[%s4] sm:$0xf]
      %s1134 = sld [smem:[#allocation2]]
      %v1135 = vstv %s1134
      %1136 = vmatprep.subr.bf16.mxu0 0
      %1137 = vmatpush1.bf16.xpose.msra.mxu0 %v1124
      %1138 = vmatprep.subr.bf16.mxu0 0
      %1139 = vmatpush1.bf16.xpose.msra.mxu0 %v1123
      %1140 = vmatprep.subr.bf16.mxu0 0
      %1141 = vmatpush1.bf16.xpose.msra.mxu0 %v1122
      %1142 = vmatprep.subr.bf16.mxu0 0
      %1143 = vmatpush1.bf16.xpose.msra.mxu0 %v1121
      %1144 = vmatprep.subr.bf16.mxu0 0
      %1145 = vmatpush1.bf16.xpose.msra.mxu0 %v1120
      %1146 = vmatprep.subr.bf16.mxu0 0
      %1147 = vmatpush1.bf16.xpose.msra.mxu0 %v1119
      %1148 = vmatprep.subr.bf16.mxu0 0
      %1149 = vmatpush1.bf16.xpose.msra.mxu0 %v1118
      %1150 = vmatprep.subr.bf16.mxu0 0
      %1151 = vmatpush1.bf16.xpose.msra.mxu0 %v1117
      %1152 = vmatprep.subr.bf16.mxu0 0
      %1153 = vmatpush2.bf16.xpose.msra.mxu0 %v1132
      %1154 = vmatprep.subr.bf16.mxu0 0
      %1155 = vmatpush2.bf16.xpose.msra.mxu0 %v1131
      %1156 = vmatprep.subr.bf16.mxu0 0
      %1157 = vmatpush2.bf16.xpose.msra.mxu0 %v1130
      %1158 = vmatprep.subr.bf16.mxu0 0
      %1159 = vmatpush2.bf16.xpose.msra.mxu0 %v1129
      %1160 = vmatprep.subr.bf16.mxu0 0
      %1161 = vmatpush2.bf16.xpose.msra.mxu0 %v1128
      %1162 = vmatprep.subr.bf16.mxu0 0
      %1163 = vmatpush2.bf16.xpose.msra.mxu0 %v1127
      %1164 = vmatprep.subr.bf16.mxu0 0
      %1165 = vmatpush2.bf16.xpose.msra.mxu0 %v1126
      %1166 = vmatprep.subr.bf16.mxu0 0
      %1167 = vmatpush2.bf16.xpose.msra.mxu0 %v1125
      %1168 = vmatprep.mubr.bf16.mxu0 0
      %1169 = vmatmul.mubr.bf16.gmra.mxu0 %v1133
      %v1170 = vpop.f32.mrf.mxu0
      %v1171 = vadd.f32 %v1135, %v1170
      %v1172 = vpop.f32.mrf.mxu0
      %v1173 = vadd.f32 %v1135, %v1172
      %v1174 = vpop.f32.mrf.mxu0
      %v1175 = vpop.f32.mrf.mxu0
      %1176 = vdwg.mxu0
      %1177 = vst [vmem:[%s254] sm:$0xff] %v1171
      %1178 = vst [vmem:[%s254 + $0x8] sm:$0xff] %v1173
      %s1179 = smul.u32 2, %s18
      %p1180 = scmp.lt.s32.totalorder %s1179, 3
      %s1181 = scalar_select %p1180, %s1179, 3
      %s1182 = smul.addr %s1181, 8
      %s1183 = scalar_lea.vmem %s6, %s1182
      // Predicated region
      $region45: #{fcn_forward.1} parent=43 // pred_check
        %p1184 = pneg %p167
      $region46: #{fcn_forward.1} parent=43 // pred_check_branch
        %1186 = sbr.rel (%p1184) target = $region48
      $region47: #{fcn_forward.1} parent=43 // pred_region
        %s1187 = smul.u32 2, %s18
      $region48: #{fcn_forward.1} parent=43 // pred_fallthru
        _
    $region44: #{fcn_forward.1} parent=5 // pred_fallthru
      _
    %p1188 = scmp.le.s32.totalorder 2, %s13
    // Predicated region
    $region49: #{fcn_forward.1} parent=5 // pred_check
      %p1189 = pneg %p1188
    $region50: #{fcn_forward.1} parent=5 // pred_check_branch
      %1191 = sbr.rel (%p1189) target = $region52
    $region51: #{fcn_forward.1} parent=5 // pred_region
      %s1192 = ssub.s32 %s13, 2
      // Predicated region
      $region53: #{fcn_forward.1} parent=51 // pred_check
        %p1193 = pneg %p173
      $region54: #{fcn_forward.1} parent=51 // pred_check_branch
        %1195 = sbr.rel (%p1193) target = $region56
      $region55: #{fcn_forward.1} parent=51 // pred_region
        %s1196 = smul.u32 2, %s19
        %p1197 = scmp.lt.s32.totalorder %s1196, 3
        %s1198 = scalar_select %p1197, %s1196, 3
        %s1199 = smul.addr %s1198, 8
        %s1200 = scalar_lea.vmem %s6, %s1199
      $region56: #{fcn_forward.1} parent=51 // pred_fallthru
        _
    $region52: #{fcn_forward.1} parent=5 // pred_fallthru
      _
  $region6: #{fcn_forward.1} parent=0 // loop_footer
    %s17 = sadd.s32 1, %s13
  $region7: #{fcn_forward.1} parent=0 // loop_footer_branch
    %12 = sbr.rel target = $region3
  $region8: #{fcn_forward.1} parent=0 // loop_exit
    _

</llo_original>
